<compile_context>
chip_gen: v7x
topology: tpu7x:2x2x1
jax: 0.10.0
libtpu: 0.0.40
codegen_flags: <defaults>
</compile_context>

<pallas_src>
import jax
import jax.numpy as jnp
from jax import lax
from jax.experimental import pallas as pl
from jax.experimental.pallas import tpu as pltpu


_LANES = 128
_INNER_CHUNKS = 128                     # chunks per inner accumulation slice
_MAX_BLOCK_BYTES = 4 * 1024 * 1024      # per input, per pipeline buffer (~4 MiB)
_VMEM_LIMIT = 48 * 1024 * 1024          # safe on v5e/v6e (128 MiB) and v7x (64 MiB)


def _make_mse_partial_kernel(block_chunks, inner, num_blocks, last_valid, sub):
    """Kernel closure over static tiling parameters.

    Each grid step reduces its (block_chunks, sub, 128) slab of squared
    differences over the leading axis into a lane-dense (1, sub, 128) partial
    sum.  The final cross-lane/sublane reduce happens in the wrapper.
    """
    ragged = last_valid != block_chunks
    nsteps = block_chunks // inner       # block_chunks is a multiple of inner

    def kernel(p_ref, t_ref, o_ref):
        if ragged:
            # Valid leading-axis chunks in THIS block (only the last block of
            # the grid can be partial; its out-of-bounds rows hold garbage
            # from the clamped DMA and must not contribute to the sum).
            limit = jnp.where(
                pl.program_id(0) == num_blocks - 1, last_valid, block_chunks
            )

        def body(s, acc):
            start = pl.multiple_of(s * inner, inner)
            sl = pl.ds(start, inner)
            p = p_ref[sl, :, :].astype(jnp.float32)
            t = t_ref[sl, :, :].astype(jnp.float32)
            d = p - t
            sq = d * d
            if ragged:
                idx = start + lax.broadcasted_iota(jnp.int32, sq.shape, 0)
                sq = jnp.where(idx < limit, sq, 0.0)
            # Reduce only over the leading (chunk) axis: pure VPU adds; the
            # cross-lane/sublane reduction is deferred to the wrapper.
            return acc + jnp.sum(sq, axis=0)

        acc = lax.fori_loop(
            0, nsteps, body, jnp.zeros((sub, _LANES), jnp.float32), unroll=True
        )
        o_ref[...] = acc[None, :, :]

    return kernel


def attn_loss(predict, target):
    """Equivalent of ATTN_LOSS.forward: mean((predict - target)**2)."""
    assert predict.shape == target.shape
    total = int(predict.size)
    if total == 0:
        return jnp.float32(0.0)

    p_item = jnp.dtype(predict.dtype).itemsize
    t_item = jnp.dtype(target.dtype).itemsize
    # Dense sublane packing for the narrowest input dtype: f32 -> 8, bf16 -> 16,
    # int8/fp8 -> 32.  (A wider dtype just spans multiple native (8,128) tiles.)
    sub = max(8, 32 // min(p_item, t_item))
    chunk_elems = sub * _LANES

    chunks_total = pl.cdiv(total, chunk_elems)
    pad = chunks_total * chunk_elems - total

    def _prep(x):
        x = x.reshape(-1)
        if pad:
            # TODO(synk): this sub-chunk zero-pad (< chunk_elems elements) still
            # costs one extra HBM pass when total % chunk_elems != 0; a reshape
            # into (chunks, sub, 128) is impossible without it.  Padded diffs
            # are exactly zero so they contribute nothing to the sum.
            x = jnp.pad(x, (0, pad))
        return x.reshape(chunks_total, sub, _LANES)    # zero-copy when pad == 0

    p3 = _prep(predict)
    t3 = _prep(target)

    # Balanced block sizing: target ~_MAX_BLOCK_BYTES per input per buffer,
    # then spread chunks evenly over the grid and round up to a multiple of
    # the inner-slice size so the streaming loop divides evenly.
    bytes_per_chunk = chunk_elems * max(p_item, t_item)
    max_block_chunks = max(_INNER_CHUNKS, _MAX_BLOCK_BYTES // bytes_per_chunk)
    nb0 = pl.cdiv(chunks_total, max_block_chunks)
    b0 = pl.cdiv(chunks_total, nb0)
    inner = min(_INNER_CHUNKS, b0)
    block_chunks = pl.cdiv(b0, inner) * inner
    num_blocks = pl.cdiv(chunks_total, block_chunks)
    last_valid = chunks_total - (num_blocks - 1) * block_chunks

    kernel = _make_mse_partial_kernel(block_chunks, inner, num_blocks, last_valid, sub)

    in_spec = pl.BlockSpec((block_chunks, sub, _LANES), lambda i: (i, 0, 0))
    out_spec = pl.BlockSpec((1, sub, _LANES), lambda i: (i, 0, 0))

    bytes_in = (p_item + t_item) * total
    cost = pl.CostEstimate(
        flops=3 * total,                         # sub, mul, add per element
        transcendentals=0,
        bytes_accessed=bytes_in + 4 * num_blocks * chunk_elems,
    )

    partials = pl.pallas_call(
        kernel,
        out_shape=jax.ShapeDtypeStruct((num_blocks, sub, _LANES), jnp.float32),
        grid_spec=pltpu.PrefetchScalarGridSpec(
            num_scalar_prefetch=0,
            grid=(num_blocks,),
            in_specs=[in_spec, in_spec],
            out_specs=out_spec,
        ),
        compiler_params=pltpu.CompilerParams(
            # Independent partial-sum blocks -> parallel axis (v7x megacore can
            # shard the stream across both TensorCores; no effect on v5e/v6e).
            dimension_semantics=("parallel",),
            vmem_limit_bytes=_VMEM_LIMIT,
        ),
        cost_estimate=cost,
    )(p3, t3)

    # Final cross-block/lane/sublane reduce + divide by the TRUE element count.
    return jnp.sum(partials) / total


if __name__ == "__main__":
    key = jax.random.PRNGKey(0)
    k1, k2 = jax.random.split(key)

    B, C, H, W = 2, 4, 16, 16
    predict = jax.random.normal(k1, (B, C, H, W), dtype=jnp.float32)
    target = jax.random.normal(k2, (B, C, H, W), dtype=jnp.float32)

    loss = attn_loss(predict, target)
    loss = jax.block_until_ready(loss)

    # Reference check (pure JAX): plain MSE over all elements.
    ref = jnp.mean((predict - target) ** 2)
    assert jnp.allclose(loss, ref, rtol=1e-5, atol=1e-6), (loss, ref)

    print("KERNEL_OK")
</pallas_src>

<mosaic_0001>
module attributes {stable_mosaic.version = 11 : i64} {
  func.func @kernel(%arg0: i32, %arg1: memref<2x8x128xf32, #tpu.memory_space<vmem>>, %arg2: memref<2x8x128xf32, #tpu.memory_space<vmem>>, %arg3: memref<1x8x128xf32, #tpu.memory_space<vmem>>) attributes {dimension_semantics = [#tpu.dimension_semantics<parallel>], iteration_bounds = array<i64: 1>, scalar_prefetch = 0 : i64, scratch_operands = 0 : i64, tpu.core_type = #tpu.core_type<tc>, window_params = [{transform_indices = @transform_0, window_bounds = array<i64: 2, 8, 128>}, {transform_indices = @transform_1, window_bounds = array<i64: 2, 8, 128>}, {transform_indices = @transform_2, window_bounds = array<i64: 1, 8, 128>}]} {
    %cst = arith.constant 0.000000e+00 : f32
    %0 = vector.broadcast %cst : f32 to vector<8x128xf32>
    %c0_i32 = arith.constant 0 : i32
    %c2_i32 = arith.constant 2 : i32
    %1 = arith.muli %c0_i32, %c2_i32 : i32
    %2 = tpu.assume_multiple %1, 2 : i32
    %3 = arith.index_cast %2 : i32 to index
    %c0 = arith.constant 0 : index
    %c0_0 = arith.constant 0 : index
    %4 = vector.load %arg1[%3, %c0, %c0_0] : memref<2x8x128xf32, #tpu.memory_space<vmem>>, vector<2x8x128xf32>
    %5 = arith.index_cast %2 : i32 to index
    %c0_1 = arith.constant 0 : index
    %c0_2 = arith.constant 0 : index
    %6 = vector.load %arg2[%5, %c0_1, %c0_2] : memref<2x8x128xf32, #tpu.memory_space<vmem>>, vector<2x8x128xf32>
    %7 = arith.subf %4, %6 : vector<2x8x128xf32>
    %8 = arith.mulf %7, %7 : vector<2x8x128xf32>
    %cst_3 = arith.constant dense<0.000000e+00> : vector<8x128xf32>
    %9 = vector.multi_reduction <add>, %8, %cst_3 [0] : vector<2x8x128xf32> to vector<8x128xf32>
    %10 = arith.addf %0, %9 : vector<8x128xf32>
    %c1_i32 = arith.constant 1 : i32
    %11 = vector.shape_cast %10 : vector<8x128xf32> to vector<1x8x128xf32>
    %c0_4 = arith.constant 0 : index
    %c0_5 = arith.constant 0 : index
    %c0_6 = arith.constant 0 : index
    %12 = vector.load %arg3[%c0_4, %c0_5, %c0_6] : memref<1x8x128xf32, #tpu.memory_space<vmem>>, vector<1x8x128xf32>
    tpu.vector_store %arg3[%c0_4, %c0_5, %c0_6], %11 {strides = array<i32>} : memref<1x8x128xf32, #tpu.memory_space<vmem>>, vector<1x8x128xf32>,
    return
  }
  func.func @transform_0(%arg0: i32) -> (i32, i32, i32) {
    %c0_i32 = arith.constant 0 : i32
    %c0_i32_0 = arith.constant 0 : i32
    %c0_i32_1 = arith.constant 0 : i32
    return %arg0, %c0_i32, %c0_i32_0 : i32, i32, i32
  }
  func.func @transform_1(%arg0: i32) -> (i32, i32, i32) {
    %c0_i32 = arith.constant 0 : i32
    %c0_i32_0 = arith.constant 0 : i32
    %c0_i32_1 = arith.constant 0 : i32
    return %arg0, %c0_i32, %c0_i32_0 : i32, i32, i32
  }
  func.func @transform_2(%arg0: i32) -> (i32, i32, i32) {
    %c0_i32 = arith.constant 0 : i32
    %c0_i32_0 = arith.constant 0 : i32
    %c0_i32_1 = arith.constant 0 : i32
    return %arg0, %c0_i32, %c0_i32_0 : i32, i32, i32
  }
}

</mosaic_0001>

<llo_original>
// kernel: tpu_custom_call.1
$region0: #{tpu_custom_call.1}
  #allocation0 [shape = 'u32[]', space=smem, size = 0x4, offset = 0x4, fixed_abs, tag = 'smem constant byte address 0x4 - core index']
  #allocation1 [shape = 'u32[144,128]{1,0:T(1,128)}', space=vmem, size = 0x12000, scoped, tag = 'internal scratch']
  %s0 = inlined_call_operand.hbm [shape: f32[2,8,128], index: 0, kind: input, shape index: {}]
  %s1 = inlined_call_operand.hbm [shape: f32[2,8,128], index: 1, kind: input, shape index: {}]
  %s2 = inlined_call_operand.hbm [shape: f32[1,8,128], index: 2, kind: output, shape index: {}]
  %s3 = sld [smem:[#allocation0]]
  $region26: #{tpu_custom_call.1} parent=0
    _
  %s5 = ssub.s32 1, %s3
  %s6 = scalar_select 0, %s5, %s3
  $region1: #{tpu_custom_call.1} parent=0
    #allocation2 [shape = 'u8[8192]{0}', space=vmem, size = 0x2000, scoped, tag = 'input window, operand 0, single buffered']
    #allocation3 [shape = 's32[1]{0}', space=sflag, size = 0x4, scoped, tag = 'scoped memory for tpu_custom_call.1']
    #allocation4 [shape = 's32[1]{0}', space=sflag, size = 0x4, scoped, tag = 'scoped memory for tpu_custom_call.1']
    #allocation5 [shape = 'u8[8192]{0}', space=vmem, size = 0x2000, scoped, tag = 'input window, operand 1, single buffered']
    #allocation6 [shape = 's32[1]{0}', space=sflag, size = 0x4, scoped, tag = 'scoped memory for tpu_custom_call.1']
    #allocation7 [shape = 'u8[4096]{0}', space=vmem, size = 0x1000, scoped, tag = 'output window, operand 0, single buffered']
    %7 = vsyncpa [#allocation3], 0
    %8 = vsyncpa [#allocation6], 0
    %9 = vsyncpa [#allocation4], 0
    // Predicated region
    $region2: #{tpu_custom_call.1} parent=1 // pred_check
      _
    $region3: #{tpu_custom_call.1} parent=1 // pred_check_branch
      %11 = sbr.rel (0) target = $region5
    $region4: #{tpu_custom_call.1} parent=1 // pred_region
      %s13 = ssub.s32 256, 256
      %14 = vsyncadd [#allocation3], %s13
      %s15 = sshll.u32 [#allocation2], 4
      %s16 = int_to_ptr.vmem [resolvable:$true] %s15
      %21 = dma.hbm_to_vmem [thread:$0]  %s0, 256, %s16, [#allocation3], 128, 128, 8
    $region5: #{tpu_custom_call.1} parent=1 // pred_fallthru
      _
    // Predicated region
    $region6: #{tpu_custom_call.1} parent=1 // pred_check
      _
    $region7: #{tpu_custom_call.1} parent=1 // pred_check_branch
      %23 = sbr.rel (0) target = $region9
    $region8: #{tpu_custom_call.1} parent=1 // pred_region
      %s25 = ssub.s32 256, 256
      %26 = vsyncadd [#allocation6], %s25
      %s27 = sshll.u32 [#allocation5], 4
      %s28 = int_to_ptr.vmem [resolvable:$true] %s27
      %33 = dma.hbm_to_vmem [thread:$0]  %s1, 256, %s28, [#allocation6], 128, 128, 8
    $region9: #{tpu_custom_call.1} parent=1 // pred_fallthru
      _
    // Predicated region
    $region10: #{tpu_custom_call.1} parent=1 // pred_check
      _
    $region11: #{tpu_custom_call.1} parent=1 // pred_check_branch
      %35 = sbr.rel (0) target = $region13
    $region12: #{tpu_custom_call.1} parent=1 // pred_region
      %36 = dma.done [#allocation3], 256
    $region13: #{tpu_custom_call.1} parent=1 // pred_fallthru
      _
    // Predicated region
    $region14: #{tpu_custom_call.1} parent=1 // pred_check
      _
    $region15: #{tpu_custom_call.1} parent=1 // pred_check_branch
      %38 = sbr.rel (0) target = $region17
    $region16: #{tpu_custom_call.1} parent=1 // pred_region
      %39 = dma.done [#allocation6], 256
    $region17: #{tpu_custom_call.1} parent=1 // pred_fallthru
      _
    %s40 = smul.u32 0, 8
    %s41 = scalar_lea.vmem [#allocation2], %s40
    %v42 = vld [vmem:[%s41] sm:$0xff]
    %v43 = vld [vmem:[%s41 + $0x8] sm:$0xff]
    %s44 = scalar_lea.vmem [#allocation5], %s40
    %v45 = vld [vmem:[%s44] sm:$0xff]
    %v46 = vld [vmem:[%s44 + $0x8] sm:$0xff]
    %v47 = vsub.f32 %v42, %v45
    %v48 = vsub.f32 %v43, %v46
    %v49 = vmul.f32 %v47, %v47
    %v50 = vmul.f32 %v48, %v48
    %v51 = vadd.f32 %v49, %v50
    %v52 = vadd.f32 %v51, 0.0
    %53 = vst [vmem:[#allocation7] sm:$0xff] %v52
    // Predicated region
    $region18: #{tpu_custom_call.1} parent=1 // pred_check
      _
    $region19: #{tpu_custom_call.1} parent=1 // pred_check_branch
      %55 = sbr.rel (0) target = $region21
    $region20: #{tpu_custom_call.1} parent=1 // pred_region
      %s57 = ssub.s32 128, 128
      %58 = vsyncadd [#allocation4], %s57
      %s60 = sshll.u32 [#allocation7], 4
      %s61 = int_to_ptr.vmem [resolvable:$true] %s60
      %63 = dma.vmem_to_hbm [thread:$0]  %s61, 128, %s2, [#allocation4]
    $region21: #{tpu_custom_call.1} parent=1 // pred_fallthru
      _
    // Predicated region
    $region22: #{tpu_custom_call.1} parent=1 // pred_check
      _
    $region23: #{tpu_custom_call.1} parent=1 // pred_check_branch
      %65 = sbr.rel (0) target = $region25
    $region24: #{tpu_custom_call.1} parent=1 // pred_region
      %66 = dma.done [#allocation4], 128
    $region25: #{tpu_custom_call.1} parent=1 // pred_fallthru
      _
    %67 = vsyncpa [#allocation3], 1
    %68 = vsyncpa [#allocation6], 1
    %69 = vsyncpa [#allocation4], 1

</llo_original>
